<compile_context>
chip_gen: v6e
topology: v6e:2x2x1
jax: 0.10.0
libtpu: 0.0.40
codegen_flags: <defaults>
</compile_context>

<pallas_src>
import functools

import jax
import jax.numpy as jnp
from jax import lax
from jax.experimental import pallas as pl
from jax.experimental.pallas import tpu as pltpu


_ALPHA = 0.2
_EPS = 1e-5


# ----------------------------------------------------------------------------
# Small helpers
# ----------------------------------------------------------------------------
def _pick_tile(m, candidates):
    for t in candidates:
        if m % t == 0:
            return t
    return m


def _mosaic_params(semantics, block_bytes):
    # Explicit scoped-VMEM limit: double-buffered blocks + headroom for
    # Mosaic internal scratch, capped well under v7x's 64 MiB physical VMEM.
    need = 2 * int(block_bytes) + (6 << 20)
    limit = max(16 << 20, min(need, 40 << 20))
    return pltpu.CompilerParams(dimension_semantics=semantics,
                                vmem_limit_bytes=limit)


# ----------------------------------------------------------------------------
# Pallas kernels
# ----------------------------------------------------------------------------
def _matmul_leaky_kernel(a_ref, b_ref, o_ref, *, alpha):
    # Conv-as-GEMM (bf16 in, f32 accumulate) + LeakyReLU, bf16 out.
    y = jnp.dot(a_ref[...], b_ref[...], preferred_element_type=jnp.float32)
    o_ref[...] = jnp.where(y > 0, y, alpha * y).astype(o_ref.dtype)


def _gemm_stats_kernel(a_ref, b_ref, y_ref, s1_ref, s2_ref):
    # BN pass 1: GEMM tile + per-tile per-channel sum and sum-of-squares.
    # Each grid step writes its own partial stats block -> fully parallel grid.
    y = jnp.dot(a_ref[...], b_ref[...], preferred_element_type=jnp.float32)
    y_ref[...] = y
    s1_ref[...] = jnp.sum(y, axis=0, keepdims=True)[None]       # (1,1,tc)
    s2_ref[...] = jnp.sum(y * y, axis=0, keepdims=True)[None]   # (1,1,tc)


def _bn_lrelu_kernel(y_ref, scale_ref, shift_ref, o_ref, *, alpha):
    # BN pass 2: folded scale/shift + LeakyReLU, bf16 out.
    z = y_ref[...] * scale_ref[...] + shift_ref[...]
    o_ref[...] = jnp.where(z > 0, z, alpha * z).astype(o_ref.dtype)


def _bn_lrelu_head_kernel(y_ref, scale_ref, shift_ref, w4_ref, o_ref, *, alpha):
    # BN pass 2 for layer 3, fused with the head Conv(256->1,4,s1,p0)+Sigmoid.
    # One tile covers whole images (rows_per_image = 16 spatial positions), so
    # the head is a VPU multiply + reduce; the layer-3 activation never goes
    # back to HBM.
    z = y_ref[...] * scale_ref[...] + shift_ref[...]
    z = jnp.where(z > 0, z, alpha * z)                      # (ti*16, C) f32
    rows, c = w4_ref.shape
    n_img = z.shape[0] // rows
    z3 = z.reshape(n_img, rows, c)                          # (ti, 16, C)
    part = jnp.sum(z3 * w4_ref[...][None, :, :], axis=2)    # (ti, 16)
    logit = jnp.sum(part, axis=1, keepdims=True)            # (ti, 1)
    o_ref[...] = jax.nn.sigmoid(logit)


# ----------------------------------------------------------------------------
# pallas_call wrappers
# ----------------------------------------------------------------------------
def conv_leaky(a, b, alpha=_ALPHA):
    """a: (M, K) bf16, b: (K, C) bf16 -> (M, C) bf16, LeakyReLU fused."""
    M, K = a.shape
    _, C = b.shape
    tm = _pick_tile(M, (2048, 1024, 512, 256, 128))
    blk_bytes = (tm * K + K * C) * 2 + tm * C * 2
    return pl.pallas_call(
        functools.partial(_matmul_leaky_kernel, alpha=alpha),
        out_shape=jax.ShapeDtypeStruct((M, C), jnp.bfloat16),
        grid=(M // tm,),
        in_specs=[pl.BlockSpec((tm, K), lambda i: (i, 0)),
                  pl.BlockSpec((K, C), lambda i: (0, 0))],
        out_specs=pl.BlockSpec((tm, C), lambda i: (i, 0)),
        compiler_params=_mosaic_params(("parallel",), blk_bytes),
    )(a, b)


def conv_gemm_stats(a, b):
    """BN pass 1.  a: (M, K) bf16, b: (K, C) bf16.

    Returns y = a @ b (f32) plus per-channel sum and sum-of-squares (C,) f32.
    Grid tiles (M, C); every block index is distinct so both axes are
    'parallel' (no accumulator carry) and VMEM use is bounded at any batch.
    """
    M, K = a.shape
    _, C = b.shape
    tc = 256 if C % 256 == 0 else (128 if C % 128 == 0 else C)
    tm = _pick_tile(M, (1024, 512, 256, 128, 64, 32, 16, 8))
    mt, ct = M // tm, C // tc
    blk_bytes = (tm * K + K * tc) * 2 + (tm * tc + 2 * tc) * 4
    y, s1, s2 = pl.pallas_call(
        _gemm_stats_kernel,
        out_shape=(jax.ShapeDtypeStruct((M, C), jnp.float32),
                   jax.ShapeDtypeStruct((mt, 1, C), jnp.float32),
                   jax.ShapeDtypeStruct((mt, 1, C), jnp.float32)),
        grid=(mt, ct),
        in_specs=[pl.BlockSpec((tm, K), lambda i, j: (i, 0)),
                  pl.BlockSpec((K, tc), lambda i, j: (0, j))],
        out_specs=(pl.BlockSpec((tm, tc), lambda i, j: (i, j)),
                   pl.BlockSpec((1, 1, tc), lambda i, j: (i, 0, j)),
                   pl.BlockSpec((1, 1, tc), lambda i, j: (i, 0, j))),
        compiler_params=_mosaic_params(("parallel", "parallel"), blk_bytes),
    )(a, b)
    # Tiny (mt, 1, C) reduces; XLA handles these outside the kernel.
    return y, jnp.sum(s1, axis=0)[0], jnp.sum(s2, axis=0)[0]


def bn_fold(s1, s2, gamma, beta, m, eps=_EPS):
    """Fold training-mode batch stats (biased variance) into scale/shift."""
    # NOTE: one-pass E[y^2]-E[y]^2 in f32; acceptable at these scales (see
    # review), switch to a centered second pass if tolerances tighten.
    mean = s1 / m
    var = s2 / m - mean * mean
    scale = gamma.astype(jnp.float32) * lax.rsqrt(var + eps)
    shift = beta.astype(jnp.float32) - mean * scale
    return scale.reshape(1, -1), shift.reshape(1, -1)


def bn_leaky_apply(y, scale, shift, alpha=_ALPHA):
    """BN pass 2: y (M, C) f32 -> (M, C) bf16 with folded BN + LeakyReLU."""
    M, C = y.shape
    tm = _pick_tile(M, (1024, 512, 256, 128, 64, 32, 16, 8))
    blk_bytes = (tm * C + 2 * C) * 4 + tm * C * 2
    return pl.pallas_call(
        functools.partial(_bn_lrelu_kernel, alpha=alpha),
        out_shape=jax.ShapeDtypeStruct((M, C), jnp.bfloat16),
        grid=(M // tm,),
        in_specs=[pl.BlockSpec((tm, C), lambda i: (i, 0)),
                  pl.BlockSpec((1, C), lambda i: (0, 0)),
                  pl.BlockSpec((1, C), lambda i: (0, 0))],
        out_specs=pl.BlockSpec((tm, C), lambda i: (i, 0)),
        compiler_params=_mosaic_params(("parallel",), blk_bytes),
    )(y, scale, shift)


def bn_leaky_head(y, scale, shift, w4_mat, n_img, alpha=_ALPHA):
    """Layer-3 BN pass 2 fused with the head: returns sigmoid logits (N, 1)."""
    M, C = y.shape
    rows = M // n_img
    assert rows == w4_mat.shape[0]
    ti = _pick_tile(n_img, (64, 32, 16, 8))      # images per tile
    tm = ti * rows
    blk_bytes = (tm * C + 2 * C + rows * C) * 4 + ti * 4
    return pl.pallas_call(
        functools.partial(_bn_lrelu_head_kernel, alpha=alpha),
        out_shape=jax.ShapeDtypeStruct((n_img, 1), jnp.float32),
        grid=(n_img // ti,),
        in_specs=[pl.BlockSpec((tm, C), lambda i: (i, 0)),
                  pl.BlockSpec((1, C), lambda i: (0, 0)),
                  pl.BlockSpec((1, C), lambda i: (0, 0)),
                  pl.BlockSpec((rows, C), lambda i: (0, 0))],
        out_specs=pl.BlockSpec((ti, 1), lambda i: (i, 0)),
        compiler_params=_mosaic_params(("parallel",), blk_bytes),
    )(y, scale, shift, w4_mat)


# ----------------------------------------------------------------------------
# Glue: NHWC im2col + weight reshapes + forward wiring
# ----------------------------------------------------------------------------
def im2col_nhwc(x, kh, kw, stride, pad):
    """x: (N, H, W, C) -> (N*Ho*Wo, kh*kw*C); column ordering = (kh, kw, C)."""
    N, H, W, C = x.shape
    if pad:
        x = jnp.pad(x, ((0, 0), (pad, pad), (pad, pad), (0, 0)))
    Ho = (H + 2 * pad - kh) // stride + 1
    Wo = (W + 2 * pad - kw) // stride + 1
    cols = []
    for i in range(kh):
        for j in range(kw):
            cols.append(lax.slice(
                x, (0, i, j, 0),
                (N, i + stride * (Ho - 1) + 1, j + stride * (Wo - 1) + 1, C),
                (1, stride, stride, 1)))
    patches = jnp.stack(cols, axis=3)                    # (N, Ho, Wo, kh*kw, C)
    return patches.reshape(N * Ho * Wo, kh * kw * C), Ho, Wo


def conv_w_to_rhs(w, cin_pad=None):
    """PyTorch Conv2d weight (Cout, Cin, kh, kw) -> GEMM rhs (kh*kw*Cin, Cout)."""
    cout, cin, kh, kw = w.shape
    wt = jnp.transpose(w, (2, 3, 1, 0))                  # (kh, kw, Cin, Cout)
    if cin_pad is not None and cin_pad > cin:
        wt = jnp.pad(wt, ((0, 0), (0, 0), (0, cin_pad - cin), (0, 0)))
        cin = cin_pad
    return wt.reshape(kh * kw * cin, cout)


def discriminator_forward(x, params):
    w1, w2, g2, b2, w3, g3, b3, w4 = params
    N = x.shape[0]

    # NCHW -> NHWC once; pad Cin 3->8 so layer-1 K = 4*4*8 = 128 (lane dense).
    x = jnp.transpose(x, (0, 2, 3, 1))
    cin_pad = 8
    x = jnp.pad(x, ((0, 0), (0, 0), (0, 0), (0, cin_pad - x.shape[-1])))
    x = x.astype(jnp.bfloat16)

    # Conv(3->64, 4, s2, p1) + LeakyReLU(0.2)
    a, ho, wo = im2col_nhwc(x, 4, 4, 2, 1)
    y = conv_leaky(a, conv_w_to_rhs(w1, cin_pad=cin_pad).astype(jnp.bfloat16))
    x = y.reshape(N, ho, wo, 64)                         # already NHWC

    # Conv(64->128, 4, s2, p1) + BatchNorm(128, train stats) + LeakyReLU(0.2)
    a, ho, wo = im2col_nhwc(x, 4, 4, 2, 1)
    y2, s1, s2 = conv_gemm_stats(a, conv_w_to_rhs(w2).astype(jnp.bfloat16))
    sc2, sh2 = bn_fold(s1, s2, g2, b2, y2.shape[0])
    y = bn_leaky_apply(y2, sc2, sh2)
    x = y.reshape(N, ho, wo, 128)

    # Conv(128->256, 4, s2, p1) + BN(256) + LeakyReLU(0.2),
    # BN-apply fused with Conv(256->1, 4, s1, p0) + Sigmoid (head).
    a, ho, wo = im2col_nhwc(x, 4, 4, 2, 1)
    assert ho == 4 and wo == 4, (
        "fused head assumes a 32x32 input (conv3 output must be 4x4, matching "
        "the original module's .view(-1, 1).squeeze(1) producing (N,) logits)")
    y3, s1, s2 = conv_gemm_stats(a, conv_w_to_rhs(w3).astype(jnp.bfloat16))
    sc3, sh3 = bn_fold(s1, s2, g3, b3, y3.shape[0])
    # conv4 weight (1, 256, 4, 4) -> (kh*kw, Cin) = (16, 256), row = i*4 + j.
    w4_mat = jnp.transpose(w4[0], (1, 2, 0)).reshape(16, 256).astype(jnp.float32)
    out = bn_leaky_head(y3, sc3, sh3, w4_mat, n_img=N)   # (N, 1) f32

    return out.reshape(-1, 1).squeeze(1)                 # (N,)


# ----------------------------------------------------------------------------
# Pure-JAX reference (f32, HIGHEST precision) for a numerical sanity check.
# ----------------------------------------------------------------------------
def reference_forward(x, params):
    w1, w2, g2, b2, w3, g3, b3, w4 = params

    def conv(x, w, s, p):
        return lax.conv_general_dilated(
            x, w, (s, s), ((p, p), (p, p)),
            dimension_numbers=('NCHW', 'OIHW', 'NCHW'),
            precision=lax.Precision.HIGHEST)

    def lrelu(v):
        return jnp.where(v > 0, v, 0.2 * v)

    def bn(v, g, b, eps=1e-5):
        mean = v.mean(axis=(0, 2, 3), keepdims=True)
        var = ((v - mean) ** 2).mean(axis=(0, 2, 3), keepdims=True)
        return (v - mean) * lax.rsqrt(var + eps) * g.reshape(1, -1, 1, 1) \
            + b.reshape(1, -1, 1, 1)

    y = lrelu(conv(x, w1, 2, 1))
    y = lrelu(bn(conv(y, w2, 2, 1), g2, b2))
    y = lrelu(bn(conv(y, w3, 2, 1), g3, b3))
    y = jax.nn.sigmoid(conv(y, w4, 1, 0))
    return y.reshape(-1, 1).squeeze(1)


# ----------------------------------------------------------------------------
if __name__ == "__main__":
    key = jax.random.PRNGKey(0)
    ks = jax.random.split(key, 9)

    N = 2
    x = jax.random.normal(ks[0], (N, 3, 32, 32), dtype=jnp.float32)

    # Deterministic parameter init (DCGAN-style scale 0.02; BN affine perturbed).
    w1 = 0.02 * jax.random.normal(ks[1], (64, 3, 4, 4), dtype=jnp.float32)
    w2 = 0.02 * jax.random.normal(ks[2], (128, 64, 4, 4), dtype=jnp.float32)
    g2 = 1.0 + 0.1 * jax.random.normal(ks[3], (128,), dtype=jnp.float32)
    b2 = 0.1 * jax.random.normal(ks[4], (128,), dtype=jnp.float32)
    w3 = 0.02 * jax.random.normal(ks[5], (256, 128, 4, 4), dtype=jnp.float32)
    g3 = 1.0 + 0.1 * jax.random.normal(ks[6], (256,), dtype=jnp.float32)
    b3 = 0.1 * jax.random.normal(ks[7], (256,), dtype=jnp.float32)
    w4 = 0.02 * jax.random.normal(ks[8], (1, 256, 4, 4), dtype=jnp.float32)

    params = (w1, w2, g2, b2, w3, g3, b3, w4)

    out = jax.block_until_ready(discriminator_forward(x, params))
    ref = jax.block_until_ready(reference_forward(x, params))

    assert out.shape == (N,), out.shape
    assert jnp.allclose(out, ref, atol=2e-2, rtol=2e-2), (out, ref)

    print("KERNEL_OK")
</pallas_src>

<mosaic_0001>
module attributes {stable_mosaic.version = 11 : i64} {
  func.func @_matmul_leaky_kernel(%arg0: i32, %arg1: memref<512x128xbf16, #tpu.memory_space<vmem>>, %arg2: memref<128x64xbf16, #tpu.memory_space<vmem>>, %arg3: memref<512x64xbf16, #tpu.memory_space<vmem>>) attributes {dimension_semantics = [#tpu.dimension_semantics<parallel>], iteration_bounds = array<i64: 1>, scalar_prefetch = 0 : i64, scratch_operands = 0 : i64, tpu.core_type = #tpu.core_type<tc>, window_params = [{transform_indices = @transform_0, window_bounds = array<i64: 512, 128>}, {pipeline_mode = #tpu.pipeline_mode<synchronous>, transform_indices = @transform_1, window_bounds = array<i64: 128, 64>}, {transform_indices = @transform_2, window_bounds = array<i64: 512, 64>}]} {
    %c0 = arith.constant 0 : index
    %c0_0 = arith.constant 0 : index
    %0 = vector.load %arg1[%c0, %c0_0] : memref<512x128xbf16, #tpu.memory_space<vmem>>, vector<512x128xbf16>
    %c0_1 = arith.constant 0 : index
    %c0_2 = arith.constant 0 : index
    %1 = vector.load %arg2[%c0_1, %c0_2] : memref<128x64xbf16, #tpu.memory_space<vmem>>, vector<128x64xbf16>
    %cst = arith.constant dense<0.000000e+00> : vector<512x64xf32>
    %2 = tpu.matmul %0, %1, %cst {dimension_numbers = #tpu.dot_dimension_numbers<[1], [0], [0], [1], [0, 0, 1, 1], [], []>} : vector<512x128xbf16>, vector<128x64xbf16>, vector<512x64xf32> -> vector<512x64xf32>
    %cst_3 = arith.constant 0.000000e+00 : f32
    %3 = vector.broadcast %cst_3 : f32 to vector<512x64xf32>
    %4 = arith.cmpf ogt, %2, %3 : vector<512x64xf32>
    %cst_4 = arith.constant 2.000000e-01 : f32
    %5 = vector.broadcast %cst_4 : f32 to vector<512x64xf32>
    %6 = arith.mulf %5, %2 : vector<512x64xf32>
    %7 = arith.select %4, %2, %6 : vector<512x64xi1>, vector<512x64xf32>
    %8 = arith.truncf %7 : vector<512x64xf32> to vector<512x64xbf16>
    %c0_5 = arith.constant 0 : index
    %c0_6 = arith.constant 0 : index
    %9 = vector.load %arg3[%c0_5, %c0_6] : memref<512x64xbf16, #tpu.memory_space<vmem>>, vector<512x64xbf16>
    tpu.vector_store %arg3[%c0_5, %c0_6], %8 {strides = array<i32>} : memref<512x64xbf16, #tpu.memory_space<vmem>>, vector<512x64xbf16>,
    return
  }
  func.func @transform_0(%arg0: i32) -> (i32, i32) {
    %c0_i32 = arith.constant 0 : i32
    %c0_i32_0 = arith.constant 0 : i32
    return %arg0, %c0_i32 : i32, i32
  }
  func.func @transform_1(%arg0: i32) -> (i32, i32) {
    %c0_i32 = arith.constant 0 : i32
    %c0_i32_0 = arith.constant 0 : i32
    %c0_i32_1 = arith.constant 0 : i32
    return %c0_i32, %c0_i32_0 : i32, i32
  }
  func.func @transform_2(%arg0: i32) -> (i32, i32) {
    %c0_i32 = arith.constant 0 : i32
    %c0_i32_0 = arith.constant 0 : i32
    return %arg0, %c0_i32 : i32, i32
  }
}

</mosaic_0001>

<llo_original>
// kernel: tpu_custom_call.1
$region0: #{tpu_custom_call.1}
  #allocation0 [shape = 'u32[]', space=smem, size = 0x4, offset = 0x4, fixed_abs, tag = 'smem constant byte address 0x4 - core index']
  #allocation1 [shape = 'u32[144,128]{1,0:T(1,128)}', space=vmem, size = 0x12000, scoped, tag = 'internal scratch']
  %s0 = inlined_call_operand.hbm [shape: bf16[512,128], index: 0, kind: input, shape index: {}]
  %s1 = inlined_call_operand.vmem [shape: bf16[128,64], index: 1, kind: input, shape index: {}]
  %s2 = inlined_call_operand.vmem [shape: bf16[512,64], index: 2, kind: output, shape index: {}]
  %s3 = sld [smem:[#allocation0]]
  $region22: #{tpu_custom_call.1} parent=0
    _
  %s5 = ssub.s32 1, %s3
  %s6 = scalar_select 0, %s5, %s3
  $region1: #{tpu_custom_call.1} parent=0
    #allocation2 [shape = 'u8[131072]{0}', space=vmem, size = 0x20000, scoped, tag = 'input window, operand 0, single buffered']
    #allocation3 [shape = 's32[1]{0}', space=sflag, size = 0x4, scoped, tag = 'scoped memory for tpu_custom_call.1']
    %7 = vsyncpa [#allocation3], 0
    // Predicated region
    $region2: #{tpu_custom_call.1} parent=1 // pred_check
      _
    $region3: #{tpu_custom_call.1} parent=1 // pred_check_branch
      %9 = sbr.rel (0) target = $region5
    $region4: #{tpu_custom_call.1} parent=1 // pred_region
      %s11 = ssub.s32 4096, 4096
      %12 = vsyncadd [#allocation3], %s11
      %s13 = sshll.u32 [#allocation2], 4
      %s14 = int_to_ptr.vmem [resolvable:$true] %s13
      %19 = dma.hbm_to_vmem [thread:$0]  %s0, 4096, %s14, [#allocation3], 64, 64, 4
    $region5: #{tpu_custom_call.1} parent=1 // pred_fallthru
      _
    // Predicated region
    $region6: #{tpu_custom_call.1} parent=1 // pred_check
      _
    $region7: #{tpu_custom_call.1} parent=1 // pred_check_branch
      %21 = sbr.rel (0) target = $region9
    $region8: #{tpu_custom_call.1} parent=1 // pred_region
      _
    $region9: #{tpu_custom_call.1} parent=1 // pred_fallthru
      _
    // Predicated region
    $region10: #{tpu_custom_call.1} parent=1 // pred_check
      _
    $region11: #{tpu_custom_call.1} parent=1 // pred_check_branch
      %23 = sbr.rel (0) target = $region13
    $region12: #{tpu_custom_call.1} parent=1 // pred_region
      %24 = dma.done [#allocation3], 4096
    $region13: #{tpu_custom_call.1} parent=1 // pred_fallthru
      _
    %v26 = vld [vmem:[#allocation2] sm:$0xf]
    %v27 = vld [vmem:[#allocation2 + $0x4] sm:$0xf]
    %v28 = vld [vmem:[#allocation2 + $0x8] sm:$0xf]
    %v29 = vld [vmem:[#allocation2 + $0xc] sm:$0xf]
    %v30 = vld [vmem:[#allocation2 + $0x10] sm:$0xf]
    %v31 = vld [vmem:[#allocation2 + $0x14] sm:$0xf]
    %v32 = vld [vmem:[#allocation2 + $0x18] sm:$0xf]
    %v33 = vld [vmem:[#allocation2 + $0x1c] sm:$0xf]
    %v34 = vld [vmem:[#allocation2 + $0x20] sm:$0xf]
    %v35 = vld [vmem:[#allocation2 + $0x24] sm:$0xf]
    %v36 = vld [vmem:[#allocation2 + $0x28] sm:$0xf]
    %v37 = vld [vmem:[#allocation2 + $0x2c] sm:$0xf]
    %v38 = vld [vmem:[#allocation2 + $0x30] sm:$0xf]
    %v39 = vld [vmem:[#allocation2 + $0x34] sm:$0xf]
    %v40 = vld [vmem:[#allocation2 + $0x38] sm:$0xf]
    %v41 = vld [vmem:[#allocation2 + $0x3c] sm:$0xf]
    %v42 = vld [vmem:[#allocation2 + $0x40] sm:$0xf]
    %v43 = vld [vmem:[#allocation2 + $0x44] sm:$0xf]
    %v44 = vld [vmem:[#allocation2 + $0x48] sm:$0xf]
    %v45 = vld [vmem:[#allocation2 + $0x4c] sm:$0xf]
    %v46 = vld [vmem:[#allocation2 + $0x50] sm:$0xf]
    %v47 = vld [vmem:[#allocation2 + $0x54] sm:$0xf]
    %v48 = vld [vmem:[#allocation2 + $0x58] sm:$0xf]
    %v49 = vld [vmem:[#allocation2 + $0x5c] sm:$0xf]
    %v50 = vld [vmem:[#allocation2 + $0x60] sm:$0xf]
    %v51 = vld [vmem:[#allocation2 + $0x64] sm:$0xf]
    %v52 = vld [vmem:[#allocation2 + $0x68] sm:$0xf]
    %v53 = vld [vmem:[#allocation2 + $0x6c] sm:$0xf]
    %v54 = vld [vmem:[#allocation2 + $0x70] sm:$0xf]
    %v55 = vld [vmem:[#allocation2 + $0x74] sm:$0xf]
    %v56 = vld [vmem:[#allocation2 + $0x78] sm:$0xf]
    %v57 = vld [vmem:[#allocation2 + $0x7c] sm:$0xf]
    %v58 = vld [vmem:[#allocation2 + $0x80] sm:$0xf]
    %v59 = vld [vmem:[#allocation2 + $0x84] sm:$0xf]
    %v60 = vld [vmem:[#allocation2 + $0x88] sm:$0xf]
    %v61 = vld [vmem:[#allocation2 + $0x8c] sm:$0xf]
    %v62 = vld [vmem:[#allocation2 + $0x90] sm:$0xf]
    %v63 = vld [vmem:[#allocation2 + $0x94] sm:$0xf]
    %v64 = vld [vmem:[#allocation2 + $0x98] sm:$0xf]
    %v65 = vld [vmem:[#allocation2 + $0x9c] sm:$0xf]
    %v66 = vld [vmem:[#allocation2 + $0xa0] sm:$0xf]
    %v67 = vld [vmem:[#allocation2 + $0xa4] sm:$0xf]
    %v68 = vld [vmem:[#allocation2 + $0xa8] sm:$0xf]
    %v69 = vld [vmem:[#allocation2 + $0xac] sm:$0xf]
    %v70 = vld [vmem:[#allocation2 + $0xb0] sm:$0xf]
    %v71 = vld [vmem:[#allocation2 + $0xb4] sm:$0xf]
    %v72 = vld [vmem:[#allocation2 + $0xb8] sm:$0xf]
    %v73 = vld [vmem:[#allocation2 + $0xbc] sm:$0xf]
    %v74 = vld [vmem:[#allocation2 + $0xc0] sm:$0xf]
    %v75 = vld [vmem:[#allocation2 + $0xc4] sm:$0xf]
    %v76 = vld [vmem:[#allocation2 + $0xc8] sm:$0xf]
    %v77 = vld [vmem:[#allocation2 + $0xcc] sm:$0xf]
    %v78 = vld [vmem:[#allocation2 + $0xd0] sm:$0xf]
    %v79 = vld [vmem:[#allocation2 + $0xd4] sm:$0xf]
    %v80 = vld [vmem:[#allocation2 + $0xd8] sm:$0xf]
    %v81 = vld [vmem:[#allocation2 + $0xdc] sm:$0xf]
    %v82 = vld [vmem:[#allocation2 + $0xe0] sm:$0xf]
    %v83 = vld [vmem:[#allocation2 + $0xe4] sm:$0xf]
    %v84 = vld [vmem:[#allocation2 + $0xe8] sm:$0xf]
    %v85 = vld [vmem:[#allocation2 + $0xec] sm:$0xf]
    %v86 = vld [vmem:[#allocation2 + $0xf0] sm:$0xf]
    %v87 = vld [vmem:[#allocation2 + $0xf4] sm:$0xf]
    %v88 = vld [vmem:[#allocation2 + $0xf8] sm:$0xf]
    %v89 = vld [vmem:[#allocation2 + $0xfc] sm:$0xf]
    %v90 = vld [vmem:[%s1] sm:$0xf]
    %v91 = vld [vmem:[%s1 + $0x4] sm:$0xf]
    %v92 = vld [vmem:[%s1 + $0x8] sm:$0xf]
    %v93 = vld [vmem:[%s1 + $0xc] sm:$0xf]
    %v94 = vld [vmem:[%s1 + $0x10] sm:$0xf]
    %v95 = vld [vmem:[%s1 + $0x14] sm:$0xf]
    %v96 = vld [vmem:[%s1 + $0x18] sm:$0xf]
    %v97 = vld [vmem:[%s1 + $0x1c] sm:$0xf]
    %v98 = vld [vmem:[%s1 + $0x20] sm:$0xf]
    %v99 = vld [vmem:[%s1 + $0x24] sm:$0xf]
    %v100 = vld [vmem:[%s1 + $0x28] sm:$0xf]
    %v101 = vld [vmem:[%s1 + $0x2c] sm:$0xf]
    %v102 = vld [vmem:[%s1 + $0x30] sm:$0xf]
    %v103 = vld [vmem:[%s1 + $0x34] sm:$0xf]
    %v104 = vld [vmem:[%s1 + $0x38] sm:$0xf]
    %v105 = vld [vmem:[%s1 + $0x3c] sm:$0xf]
    %v170 = vunpack.c.l.b16 %v26
    %v171 = vunpack.c.l.b16 %v27
    %v172 = vunpack.c.l.b16 %v28
    %v173 = vunpack.c.l.b16 %v29
    %v174 = vunpack.c.l.b16 %v30
    %v175 = vunpack.c.l.b16 %v31
    %v176 = vunpack.c.l.b16 %v32
    %v177 = vunpack.c.l.b16 %v33
    %v178 = vunpack.c.l.b16 %v34
    %v179 = vunpack.c.l.b16 %v35
    %v180 = vunpack.c.l.b16 %v36
    %v181 = vunpack.c.l.b16 %v37
    %v182 = vunpack.c.l.b16 %v38
    %v183 = vunpack.c.l.b16 %v39
    %v184 = vunpack.c.l.b16 %v40
    %v185 = vunpack.c.l.b16 %v41
    %v186 = vunpack.c.l.b16 %v42
    %v187 = vunpack.c.l.b16 %v43
    %v188 = vunpack.c.l.b16 %v44
    %v189 = vunpack.c.l.b16 %v45
    %v190 = vunpack.c.l.b16 %v46
    %v191 = vunpack.c.l.b16 %v47
    %v192 = vunpack.c.l.b16 %v48
    %v193 = vunpack.c.l.b16 %v49
    %v194 = vunpack.c.l.b16 %v50
    %v195 = vunpack.c.l.b16 %v51
    %v196 = vunpack.c.l.b16 %v52
    %v197 = vunpack.c.l.b16 %v53
    %v198 = vunpack.c.l.b16 %v54
    %v199 = vunpack.c.l.b16 %v55
    %v200 = vunpack.c.l.b16 %v56
    %v201 = vunpack.c.l.b16 %v57
    %v202 = vunpack.c.l.b16 %v58
    %v203 = vunpack.c.l.b16 %v59
    %v204 = vunpack.c.l.b16 %v60
    %v205 = vunpack.c.l.b16 %v61
    %v206 = vunpack.c.l.b16 %v62
    %v207 = vunpack.c.l.b16 %v63
    %v208 = vunpack.c.l.b16 %v64
    %v209 = vunpack.c.l.b16 %v65
    %v210 = vunpack.c.l.b16 %v66
    %v211 = vunpack.c.l.b16 %v67
    %v212 = vunpack.c.l.b16 %v68
    %v213 = vunpack.c.l.b16 %v69
    %v214 = vunpack.c.l.b16 %v70
    %v215 = vunpack.c.l.b16 %v71
    %v216 = vunpack.c.l.b16 %v72
    %v217 = vunpack.c.l.b16 %v73
    %v218 = vunpack.c.l.b16 %v74
    %v219 = vunpack.c.l.b16 %v75
    %v220 = vunpack.c.l.b16 %v76
    %v221 = vunpack.c.l.b16 %v77
    %v222 = vunpack.c.l.b16 %v78
    %v223 = vunpack.c.l.b16 %v79
    %v224 = vunpack.c.l.b16 %v80
    %v225 = vunpack.c.l.b16 %v81
    %v226 = vunpack.c.l.b16 %v82
    %v227 = vunpack.c.l.b16 %v83
    %v228 = vunpack.c.l.b16 %v84
    %v229 = vunpack.c.l.b16 %v85
    %v230 = vunpack.c.l.b16 %v86
    %v231 = vunpack.c.l.b16 %v87
    %v232 = vunpack.c.l.b16 %v88
    %v233 = vunpack.c.l.b16 %v89
    %v234 = vpack.c.b16 %v171, %v170
    %v235 = vpack.c.b16 %v173, %v172
    %v236 = vpack.c.b16 %v175, %v174
    %v237 = vpack.c.b16 %v177, %v176
    %v238 = vpack.c.b16 %v179, %v178
    %v239 = vpack.c.b16 %v181, %v180
    %v240 = vpack.c.b16 %v183, %v182
    %v241 = vpack.c.b16 %v185, %v184
    %v242 = vpack.c.b16 %v187, %v186
    %v243 = vpack.c.b16 %v189, %v188
    %v244 = vpack.c.b16 %v191, %v190
    %v245 = vpack.c.b16 %v193, %v192
    %v246 = vpack.c.b16 %v195, %v194
    %v247 = vpack.c.b16 %v197, %v196
    %v248 = vpack.c.b16 %v199, %v198
    %v249 = vpack.c.b16 %v201, %v200
    %v250 = vpack.c.b16 %v203, %v202
    %v251 = vpack.c.b16 %v205, %v204
    %v252 = vpack.c.b16 %v207, %v206
    %v253 = vpack.c.b16 %v209, %v208
    %v254 = vpack.c.b16 %v211, %v210
    %v255 = vpack.c.b16 %v213, %v212
    %v256 = vpack.c.b16 %v215, %v214
    %v257 = vpack.c.b16 %v217, %v216
    %v258 = vpack.c.b16 %v219, %v218
    %v259 = vpack.c.b16 %v221, %v220
    %v260 = vpack.c.b16 %v223, %v222
    %v261 = vpack.c.b16 %v225, %v224
    %v262 = vpack.c.b16 %v227, %v226
    %v263 = vpack.c.b16 %v229, %v228
    %v264 = vpack.c.b16 %v231, %v230
    %v265 = vpack.c.b16 %v233, %v232
    %v314 = vunpack.c.l.b16 %v90
    %v315 = vunpack.c.l.b16 %v91
    %v316 = vunpack.c.l.b16 %v92
    %v317 = vunpack.c.l.b16 %v93
    %v318 = vunpack.c.l.b16 %v94
    %v319 = vunpack.c.l.b16 %v95
    %v320 = vunpack.c.l.b16 %v96
    %v321 = vunpack.c.l.b16 %v97
    %v322 = vunpack.c.l.b16 %v98
    %v323 = vunpack.c.l.b16 %v99
    %v324 = vunpack.c.l.b16 %v100
    %v325 = vunpack.c.l.b16 %v101
    %v326 = vunpack.c.l.b16 %v102
    %v327 = vunpack.c.l.b16 %v103
    %v328 = vunpack.c.l.b16 %v104
    %v329 = vunpack.c.l.b16 %v105
    %v330 = vpack.c.b16 %v315, %v314
    %v331 = vpack.c.b16 %v317, %v316
    %v332 = vpack.c.b16 %v319, %v318
    %v333 = vpack.c.b16 %v321, %v320
    %v334 = vpack.c.b16 %v323, %v322
    %v335 = vpack.c.b16 %v325, %v324
    %v336 = vpack.c.b16 %v327, %v326
    %v337 = vpack.c.b16 %v329, %v328
    %346 = vmatprep.subr.bf16.mxu0 0
    %347 = vmatpush1.bf16.msra.mxu0 %v337
    %348 = vmatprep.subr.bf16.mxu0 0
    %349 = vmatpush1.bf16.msra.mxu0 %v336
    %350 = vmatprep.subr.bf16.mxu0 0
    %351 = vmatpush1.bf16.msra.mxu0 %v335
    %352 = vmatprep.subr.bf16.mxu0 0
    %353 = vmatpush1.bf16.msra.mxu0 %v334
    %354 = vmatprep.subr.bf16.mxu0 0
    %355 = vmatpush1.bf16.msra.mxu0 %v333
    %356 = vmatprep.subr.bf16.mxu0 0
    %357 = vmatpush1.bf16.msra.mxu0 %v332
    %358 = vmatprep.subr.bf16.mxu0 0
    %359 = vmatpush1.bf16.msra.mxu0 %v331
    %360 = vmatprep.subr.bf16.mxu0 0
    %361 = vmatpush1.bf16.msra.mxu0 %v330
    %362 = vmatprep.subr.bf16.mxu0 0
    %363 = vmatpush2.bf16.msra.mxu0 0
    %364 = vmatprep.subr.bf16.mxu0 0
    %365 = vmatpush2.bf16.msra.mxu0 0
    %366 = vmatprep.subr.bf16.mxu0 0
    %367 = vmatpush2.bf16.msra.mxu0 0
    %368 = vmatprep.subr.bf16.mxu0 0
    %369 = vmatpush2.bf16.msra.mxu0 0
    %370 = vmatprep.subr.bf16.mxu0 0
    %371 = vmatpush2.bf16.msra.mxu0 0
    %372 = vmatprep.subr.bf16.mxu0 0
    %373 = vmatpush2.bf16.msra.mxu0 0
    %374 = vmatprep.subr.bf16.mxu0 0
    %375 = vmatpush2.bf16.msra.mxu0 0
    %376 = vmatprep.subr.bf16.mxu0 0
    %377 = vmatpush2.bf16.msra.mxu0 0
    %378 = vmatprep.mubr.bf16.mxu0 0
    %379 = vmatmul.mubr.bf16.gmra.mxu0 %v234
    %v380 = vpop.f32.mrf.mxu0
    %v381 = vadd.f32 0.0, %v380
    %v382 = vpop.f32.mrf.mxu0
    %v383 = vpop.f32.mrf.mxu0
    %v384 = vadd.f32 0.0, %v383
    %v385 = vpop.f32.mrf.mxu0
    %386 = vmatprep.mubr.bf16.mxu0 0
    %387 = vmatmul.mubr.bf16.gmra.mxu0 %v235
    %v388 = vpop.f32.mrf.mxu0
    %v389 = vadd.f32 0.0, %v388
    %v390 = vpop.f32.mrf.mxu0
    %v391 = vpop.f32.mrf.mxu0
    %v392 = vadd.f32 0.0, %v391
    %v393 = vpop.f32.mrf.mxu0
    %394 = vmatprep.mubr.bf16.mxu0 0
    %395 = vmatmul.mubr.bf16.gmra.mxu0 %v236
    %v396 = vpop.f32.mrf.mxu0
    %v397 = vadd.f32 0.0, %v396
    %v398 = vpop.f32.mrf.mxu0
    %v399 = vpop.f32.mrf.mxu0
    %v400 = vadd.f32 0.0, %v399
    %v401 = vpop.f32.mrf.mxu0
    %402 = vmatprep.mubr.bf16.mxu0 0
    %403 = vmatmul.mubr.bf16.gmra.mxu0 %v237
    %v404 = vpop.f32.mrf.mxu0
    %v405 = vadd.f32 0.0, %v404
    %v406 = vpop.f32.mrf.mxu0
    %v407 = vpop.f32.mrf.mxu0
    %v408 = vadd.f32 0.0, %v407
    %v409 = vpop.f32.mrf.mxu0
    %410 = vmatprep.mubr.bf16.mxu0 0
    %411 = vmatmul.mubr.bf16.gmra.mxu0 %v238
    %v412 = vpop.f32.mrf.mxu0
    %v413 = vadd.f32 0.0, %v412
    %v414 = vpop.f32.mrf.mxu0
    %v415 = vpop.f32.mrf.mxu0
    %v416 = vadd.f32 0.0, %v415
    %v417 = vpop.f32.mrf.mxu0
    %418 = vmatprep.mubr.bf16.mxu0 0
    %419 = vmatmul.mubr.bf16.gmra.mxu0 %v239
    %v420 = vpop.f32.mrf.mxu0
    %v421 = vadd.f32 0.0, %v420
    %v422 = vpop.f32.mrf.mxu0
    %v423 = vpop.f32.mrf.mxu0
    %v424 = vadd.f32 0.0, %v423
    %v425 = vpop.f32.mrf.mxu0
    %426 = vmatprep.mubr.bf16.mxu0 0
    %427 = vmatmul.mubr.bf16.gmra.mxu0 %v240
    %v428 = vpop.f32.mrf.mxu0
    %v429 = vadd.f32 0.0, %v428
    %v430 = vpop.f32.mrf.mxu0
    %v431 = vpop.f32.mrf.mxu0
    %v432 = vadd.f32 0.0, %v431
    %v433 = vpop.f32.mrf.mxu0
    %434 = vmatprep.mubr.bf16.mxu0 0
    %435 = vmatmul.mubr.bf16.gmra.mxu0 %v241
    %v436 = vpop.f32.mrf.mxu0
    %v437 = vadd.f32 0.0, %v436
    %v438 = vpop.f32.mrf.mxu0
    %v439 = vpop.f32.mrf.mxu0
    %v440 = vadd.f32 0.0, %v439
    %v441 = vpop.f32.mrf.mxu0
    %442 = vmatprep.mubr.bf16.mxu0 0
    %443 = vmatmul.mubr.bf16.gmra.mxu0 %v242
    %v444 = vpop.f32.mrf.mxu0
    %v445 = vadd.f32 0.0, %v444
    %v446 = vpop.f32.mrf.mxu0
    %v447 = vpop.f32.mrf.mxu0
    %v448 = vadd.f32 0.0, %v447
    %v449 = vpop.f32.mrf.mxu0
    %450 = vmatprep.mubr.bf16.mxu0 0
    %451 = vmatmul.mubr.bf16.gmra.mxu0 %v243
    %v452 = vpop.f32.mrf.mxu0
    %v453 = vadd.f32 0.0, %v452
    %v454 = vpop.f32.mrf.mxu0
    %v455 = vpop.f32.mrf.mxu0
    %v456 = vadd.f32 0.0, %v455
    %v457 = vpop.f32.mrf.mxu0
    %458 = vmatprep.mubr.bf16.mxu0 0
    %459 = vmatmul.mubr.bf16.gmra.mxu0 %v244
    %v460 = vpop.f32.mrf.mxu0
    %v461 = vadd.f32 0.0, %v460
    %v462 = vpop.f32.mrf.mxu0
    %v463 = vpop.f32.mrf.mxu0
    %v464 = vadd.f32 0.0, %v463
    %v465 = vpop.f32.mrf.mxu0
    %466 = vmatprep.mubr.bf16.mxu0 0
    %467 = vmatmul.mubr.bf16.gmra.mxu0 %v245
    %v468 = vpop.f32.mrf.mxu0
    %v469 = vadd.f32 0.0, %v468
    %v470 = vpop.f32.mrf.mxu0
    %v471 = vpop.f32.mrf.mxu0
    %v472 = vadd.f32 0.0, %v471
    %v473 = vpop.f32.mrf.mxu0
    %474 = vmatprep.mubr.bf16.mxu0 0
    %475 = vmatmul.mubr.bf16.gmra.mxu0 %v246
    %v476 = vpop.f32.mrf.mxu0
    %v477 = vadd.f32 0.0, %v476
    %v478 = vpop.f32.mrf.mxu0
    %v479 = vpop.f32.mrf.mxu0
    %v480 = vadd.f32 0.0, %v479
    %v481 = vpop.f32.mrf.mxu0
    %482 = vmatprep.mubr.bf16.mxu0 0
    %483 = vmatmul.mubr.bf16.gmra.mxu0 %v247
    %v484 = vpop.f32.mrf.mxu0
    %v485 = vadd.f32 0.0, %v484
    %v486 = vpop.f32.mrf.mxu0
    %v487 = vpop.f32.mrf.mxu0
    %v488 = vadd.f32 0.0, %v487
    %v489 = vpop.f32.mrf.mxu0
    %490 = vmatprep.mubr.bf16.mxu0 0
    %491 = vmatmul.mubr.bf16.gmra.mxu0 %v248
    %v492 = vpop.f32.mrf.mxu0
    %v493 = vadd.f32 0.0, %v492
    %v494 = vpop.f32.mrf.mxu0
    %v495 = vpop.f32.mrf.mxu0
    %v496 = vadd.f32 0.0, %v495
    %v497 = vpop.f32.mrf.mxu0
    %498 = vmatprep.mubr.bf16.mxu0 0
    %499 = vmatmul.mubr.bf16.gmra.mxu0 %v249
    %v500 = vpop.f32.mrf.mxu0
    %v501 = vadd.f32 0.0, %v500
    %v502 = vpop.f32.mrf.mxu0
    %v503 = vpop.f32.mrf.mxu0
    %v504 = vadd.f32 0.0, %v503
    %v505 = vpop.f32.mrf.mxu0
    %506 = vmatprep.mubr.bf16.mxu0 0
    %507 = vmatmul.mubr.bf16.gmra.mxu0 %v250
    %v508 = vpop.f32.mrf.mxu0
    %v509 = vadd.f32 0.0, %v508
    %v510 = vpop.f32.mrf.mxu0
    %v511 = vpop.f32.mrf.mxu0
    %v512 = vadd.f32 0.0, %v511
    %v513 = vpop.f32.mrf.mxu0
    %514 = vmatprep.mubr.bf16.mxu0 0
    %515 = vmatmul.mubr.bf16.gmra.mxu0 %v251
    %v516 = vpop.f32.mrf.mxu0
    %v517 = vadd.f32 0.0, %v516
    %v518 = vpop.f32.mrf.mxu0
    %v519 = vpop.f32.mrf.mxu0
    %v520 = vadd.f32 0.0, %v519
    %v521 = vpop.f32.mrf.mxu0
    %522 = vmatprep.mubr.bf16.mxu0 0
    %523 = vmatmul.mubr.bf16.gmra.mxu0 %v252
    %v524 = vpop.f32.mrf.mxu0
    %v525 = vadd.f32 0.0, %v524
    %v526 = vpop.f32.mrf.mxu0
    %v527 = vpop.f32.mrf.mxu0
    %v528 = vadd.f32 0.0, %v527
    %v529 = vpop.f32.mrf.mxu0
    %530 = vmatprep.mubr.bf16.mxu0 0
    %531 = vmatmul.mubr.bf16.gmra.mxu0 %v253
    %v532 = vpop.f32.mrf.mxu0
    %v533 = vadd.f32 0.0, %v532
    %v534 = vpop.f32.mrf.mxu0
    %v535 = vpop.f32.mrf.mxu0
    %v536 = vadd.f32 0.0, %v535
    %v537 = vpop.f32.mrf.mxu0
    %538 = vmatprep.mubr.bf16.mxu0 0
    %539 = vmatmul.mubr.bf16.gmra.mxu0 %v254
    %v540 = vpop.f32.mrf.mxu0
    %v541 = vadd.f32 0.0, %v540
    %v542 = vpop.f32.mrf.mxu0
    %v543 = vpop.f32.mrf.mxu0
    %v544 = vadd.f32 0.0, %v543
    %v545 = vpop.f32.mrf.mxu0
    %546 = vmatprep.mubr.bf16.mxu0 0
    %547 = vmatmul.mubr.bf16.gmra.mxu0 %v255
    %v548 = vpop.f32.mrf.mxu0
    %v549 = vadd.f32 0.0, %v548
    %v550 = vpop.f32.mrf.mxu0
    %v551 = vpop.f32.mrf.mxu0
    %v552 = vadd.f32 0.0, %v551
    %v553 = vpop.f32.mrf.mxu0
    %554 = vmatprep.mubr.bf16.mxu0 0
    %555 = vmatmul.mubr.bf16.gmra.mxu0 %v256
    %v556 = vpop.f32.mrf.mxu0
    %v557 = vadd.f32 0.0, %v556
    %v558 = vpop.f32.mrf.mxu0
    %v559 = vpop.f32.mrf.mxu0
    %v560 = vadd.f32 0.0, %v559
    %v561 = vpop.f32.mrf.mxu0
    %562 = vmatprep.mubr.bf16.mxu0 0
    %563 = vmatmul.mubr.bf16.gmra.mxu0 %v257
    %v564 = vpop.f32.mrf.mxu0
    %v565 = vadd.f32 0.0, %v564
    %v566 = vpop.f32.mrf.mxu0
    %v567 = vpop.f32.mrf.mxu0
    %v568 = vadd.f32 0.0, %v567
    %v569 = vpop.f32.mrf.mxu0
    %570 = vmatprep.mubr.bf16.mxu0 0
    %571 = vmatmul.mubr.bf16.gmra.mxu0 %v258
    %v572 = vpop.f32.mrf.mxu0
    %v573 = vadd.f32 0.0, %v572
    %v574 = vpop.f32.mrf.mxu0
    %v575 = vpop.f32.mrf.mxu0
    %v576 = vadd.f32 0.0, %v575
    %v577 = vpop.f32.mrf.mxu0
    %578 = vmatprep.mubr.bf16.mxu0 0
    %579 = vmatmul.mubr.bf16.gmra.mxu0 %v259
    %v580 = vpop.f32.mrf.mxu0
    %v581 = vadd.f32 0.0, %v580
    %v582 = vpop.f32.mrf.mxu0
    %v583 = vpop.f32.mrf.mxu0
    %v584 = vadd.f32 0.0, %v583
    %v585 = vpop.f32.mrf.mxu0
    %586 = vmatprep.mubr.bf16.mxu0 0
    %587 = vmatmul.mubr.bf16.gmra.mxu0 %v260
    %v588 = vpop.f32.mrf.mxu0
    %v589 = vadd.f32 0.0, %v588
    %v590 = vpop.f32.mrf.mxu0
    %v591 = vpop.f32.mrf.mxu0
    %v592 = vadd.f32 0.0, %v591
    %v593 = vpop.f32.mrf.mxu0
    %594 = vmatprep.mubr.bf16.mxu0 0
    %595 = vmatmul.mubr.bf16.gmra.mxu0 %v261
    %v596 = vpop.f32.mrf.mxu0
    %v597 = vadd.f32 0.0, %v596
    %v598 = vpop.f32.mrf.mxu0
    %v599 = vpop.f32.mrf.mxu0
    %v600 = vadd.f32 0.0, %v599
    %v601 = vpop.f32.mrf.mxu0
    %602 = vmatprep.mubr.bf16.mxu0 0
    %603 = vmatmul.mubr.bf16.gmra.mxu0 %v262
    %v604 = vpop.f32.mrf.mxu0
    %v605 = vadd.f32 0.0, %v604
    %v606 = vpop.f32.mrf.mxu0
    %v607 = vpop.f32.mrf.mxu0
    %v608 = vadd.f32 0.0, %v607
    %v609 = vpop.f32.mrf.mxu0
    %610 = vmatprep.mubr.bf16.mxu0 0
    %611 = vmatmul.mubr.bf16.gmra.mxu0 %v263
    %v612 = vpop.f32.mrf.mxu0
    %v613 = vadd.f32 0.0, %v612
    %v614 = vpop.f32.mrf.mxu0
    %v615 = vpop.f32.mrf.mxu0
    %v616 = vadd.f32 0.0, %v615
    %v617 = vpop.f32.mrf.mxu0
    %618 = vmatprep.mubr.bf16.mxu0 0
    %619 = vmatmul.mubr.bf16.gmra.mxu0 %v264
    %v620 = vpop.f32.mrf.mxu0
    %v621 = vadd.f32 0.0, %v620
    %v622 = vpop.f32.mrf.mxu0
    %v623 = vpop.f32.mrf.mxu0
    %v624 = vadd.f32 0.0, %v623
    %v625 = vpop.f32.mrf.mxu0
    %626 = vmatprep.mubr.bf16.mxu0 0
    %627 = vmatmul.mubr.bf16.gmra.mxu0 %v265
    %v628 = vpop.f32.mrf.mxu0
    %v629 = vadd.f32 0.0, %v628
    %v630 = vpop.f32.mrf.mxu0
    %v631 = vpop.f32.mrf.mxu0
    %v632 = vadd.f32 0.0, %v631
    %v633 = vpop.f32.mrf.mxu0
    %634 = vdwg.mxu0
    %vm635 = vcmp.gt.f32.partialorder %v381, 0.0
    %vm636 = vcmp.gt.f32.partialorder %v384, 0.0
    %vm637 = vcmp.gt.f32.partialorder %v389, 0.0
    %vm638 = vcmp.gt.f32.partialorder %v392, 0.0
    %vm639 = vcmp.gt.f32.partialorder %v397, 0.0
    %vm640 = vcmp.gt.f32.partialorder %v400, 0.0
    %vm641 = vcmp.gt.f32.partialorder %v405, 0.0
    %vm642 = vcmp.gt.f32.partialorder %v408, 0.0
    %vm643 = vcmp.gt.f32.partialorder %v413, 0.0
    %vm644 = vcmp.gt.f32.partialorder %v416, 0.0
    %vm645 = vcmp.gt.f32.partialorder %v421, 0.0
    %vm646 = vcmp.gt.f32.partialorder %v424, 0.0
    %vm647 = vcmp.gt.f32.partialorder %v429, 0.0
    %vm648 = vcmp.gt.f32.partialorder %v432, 0.0
    %vm649 = vcmp.gt.f32.partialorder %v437, 0.0
    %vm650 = vcmp.gt.f32.partialorder %v440, 0.0
    %vm651 = vcmp.gt.f32.partialorder %v445, 0.0
    %vm652 = vcmp.gt.f32.partialorder %v448, 0.0
    %vm653 = vcmp.gt.f32.partialorder %v453, 0.0
    %vm654 = vcmp.gt.f32.partialorder %v456, 0.0
    %vm655 = vcmp.gt.f32.partialorder %v461, 0.0
    %vm656 = vcmp.gt.f32.partialorder %v464, 0.0
    %vm657 = vcmp.gt.f32.partialorder %v469, 0.0
    %vm658 = vcmp.gt.f32.partialorder %v472, 0.0
    %vm659 = vcmp.gt.f32.partialorder %v477, 0.0
    %vm660 = vcmp.gt.f32.partialorder %v480, 0.0
    %vm661 = vcmp.gt.f32.partialorder %v485, 0.0
    %vm662 = vcmp.gt.f32.partialorder %v488, 0.0
    %vm663 = vcmp.gt.f32.partialorder %v493, 0.0
    %vm664 = vcmp.gt.f32.partialorder %v496, 0.0
    %vm665 = vcmp.gt.f32.partialorder %v501, 0.0
    %vm666 = vcmp.gt.f32.partialorder %v504, 0.0
    %vm667 = vcmp.gt.f32.partialorder %v509, 0.0
    %vm668 = vcmp.gt.f32.partialorder %v512, 0.0
    %vm669 = vcmp.gt.f32.partialorder %v517, 0.0
    %vm670 = vcmp.gt.f32.partialorder %v520, 0.0
    %vm671 = vcmp.gt.f32.partialorder %v525, 0.0
    %vm672 = vcmp.gt.f32.partialorder %v528, 0.0
    %vm673 = vcmp.gt.f32.partialorder %v533, 0.0
    %vm674 = vcmp.gt.f32.partialorder %v536, 0.0
    %vm675 = vcmp.gt.f32.partialorder %v541, 0.0
    %vm676 = vcmp.gt.f32.partialorder %v544, 0.0
    %vm677 = vcmp.gt.f32.partialorder %v549, 0.0
    %vm678 = vcmp.gt.f32.partialorder %v552, 0.0
    %vm679 = vcmp.gt.f32.partialorder %v557, 0.0
    %vm680 = vcmp.gt.f32.partialorder %v560, 0.0
    %vm681 = vcmp.gt.f32.partialorder %v565, 0.0
    %vm682 = vcmp.gt.f32.partialorder %v568, 0.0
    %vm683 = vcmp.gt.f32.partialorder %v573, 0.0
    %vm684 = vcmp.gt.f32.partialorder %v576, 0.0
    %vm685 = vcmp.gt.f32.partialorder %v581, 0.0
    %vm686 = vcmp.gt.f32.partialorder %v584, 0.0
    %vm687 = vcmp.gt.f32.partialorder %v589, 0.0
    %vm688 = vcmp.gt.f32.partialorder %v592, 0.0
    %vm689 = vcmp.gt.f32.partialorder %v597, 0.0
    %vm690 = vcmp.gt.f32.partialorder %v600, 0.0
    %vm691 = vcmp.gt.f32.partialorder %v605, 0.0
    %vm692 = vcmp.gt.f32.partialorder %v608, 0.0
    %vm693 = vcmp.gt.f32.partialorder %v613, 0.0
    %vm694 = vcmp.gt.f32.partialorder %v616, 0.0
    %vm695 = vcmp.gt.f32.partialorder %v621, 0.0
    %vm696 = vcmp.gt.f32.partialorder %v624, 0.0
    %vm697 = vcmp.gt.f32.partialorder %v629, 0.0
    %vm698 = vcmp.gt.f32.partialorder %v632, 0.0
    %v699 = vmul.f32 %v381, 0.2
    %v700 = vmul.f32 %v384, 0.2
    %v701 = vmul.f32 %v389, 0.2
    %v702 = vmul.f32 %v392, 0.2
    %v703 = vmul.f32 %v397, 0.2
    %v704 = vmul.f32 %v400, 0.2
    %v705 = vmul.f32 %v405, 0.2
    %v706 = vmul.f32 %v408, 0.2
    %v707 = vmul.f32 %v413, 0.2
    %v708 = vmul.f32 %v416, 0.2
    %v709 = vmul.f32 %v421, 0.2
    %v710 = vmul.f32 %v424, 0.2
    %v711 = vmul.f32 %v429, 0.2
    %v712 = vmul.f32 %v432, 0.2
    %v713 = vmul.f32 %v437, 0.2
    %v714 = vmul.f32 %v440, 0.2
    %v715 = vmul.f32 %v445, 0.2
    %v716 = vmul.f32 %v448, 0.2
    %v717 = vmul.f32 %v453, 0.2
    %v718 = vmul.f32 %v456, 0.2
    %v719 = vmul.f32 %v461, 0.2
    %v720 = vmul.f32 %v464, 0.2
    %v721 = vmul.f32 %v469, 0.2
    %v722 = vmul.f32 %v472, 0.2
    %v723 = vmul.f32 %v477, 0.2
    %v724 = vmul.f32 %v480, 0.2
    %v725 = vmul.f32 %v485, 0.2
    %v726 = vmul.f32 %v488, 0.2
    %v727 = vmul.f32 %v493, 0.2
    %v728 = vmul.f32 %v496, 0.2
    %v729 = vmul.f32 %v501, 0.2
    %v730 = vmul.f32 %v504, 0.2
    %v731 = vmul.f32 %v509, 0.2
    %v732 = vmul.f32 %v512, 0.2
    %v733 = vmul.f32 %v517, 0.2
    %v734 = vmul.f32 %v520, 0.2
    %v735 = vmul.f32 %v525, 0.2
    %v736 = vmul.f32 %v528, 0.2
    %v737 = vmul.f32 %v533, 0.2
    %v738 = vmul.f32 %v536, 0.2
    %v739 = vmul.f32 %v541, 0.2
    %v740 = vmul.f32 %v544, 0.2
    %v741 = vmul.f32 %v549, 0.2
    %v742 = vmul.f32 %v552, 0.2
    %v743 = vmul.f32 %v557, 0.2
    %v744 = vmul.f32 %v560, 0.2
    %v745 = vmul.f32 %v565, 0.2
    %v746 = vmul.f32 %v568, 0.2
    %v747 = vmul.f32 %v573, 0.2
    %v748 = vmul.f32 %v576, 0.2
    %v749 = vmul.f32 %v581, 0.2
    %v750 = vmul.f32 %v584, 0.2
    %v751 = vmul.f32 %v589, 0.2
    %v752 = vmul.f32 %v592, 0.2
    %v753 = vmul.f32 %v597, 0.2
    %v754 = vmul.f32 %v600, 0.2
    %v755 = vmul.f32 %v605, 0.2
    %v756 = vmul.f32 %v608, 0.2
    %v757 = vmul.f32 %v613, 0.2
    %v758 = vmul.f32 %v616, 0.2
    %v759 = vmul.f32 %v621, 0.2
    %v760 = vmul.f32 %v624, 0.2
    %v761 = vmul.f32 %v629, 0.2
    %v762 = vmul.f32 %v632, 0.2
    %v763 = vsel %vm635, %v381, %v699
    %v764 = vsel %vm636, %v384, %v700
    %v765 = vsel %vm637, %v389, %v701
    %v766 = vsel %vm638, %v392, %v702
    %v767 = vsel %vm639, %v397, %v703
    %v768 = vsel %vm640, %v400, %v704
    %v769 = vsel %vm641, %v405, %v705
    %v770 = vsel %vm642, %v408, %v706
    %v771 = vsel %vm643, %v413, %v707
    %v772 = vsel %vm644, %v416, %v708
    %v773 = vsel %vm645, %v421, %v709
    %v774 = vsel %vm646, %v424, %v710
    %v775 = vsel %vm647, %v429, %v711
    %v776 = vsel %vm648, %v432, %v712
    %v777 = vsel %vm649, %v437, %v713
    %v778 = vsel %vm650, %v440, %v714
    %v779 = vsel %vm651, %v445, %v715
    %v780 = vsel %vm652, %v448, %v716
    %v781 = vsel %vm653, %v453, %v717
    %v782 = vsel %vm654, %v456, %v718
    %v783 = vsel %vm655, %v461, %v719
    %v784 = vsel %vm656, %v464, %v720
    %v785 = vsel %vm657, %v469, %v721
    %v786 = vsel %vm658, %v472, %v722
    %v787 = vsel %vm659, %v477, %v723
    %v788 = vsel %vm660, %v480, %v724
    %v789 = vsel %vm661, %v485, %v725
    %v790 = vsel %vm662, %v488, %v726
    %v791 = vsel %vm663, %v493, %v727
    %v792 = vsel %vm664, %v496, %v728
    %v793 = vsel %vm665, %v501, %v729
    %v794 = vsel %vm666, %v504, %v730
    %v795 = vsel %vm667, %v509, %v731
    %v796 = vsel %vm668, %v512, %v732
    %v797 = vsel %vm669, %v517, %v733
    %v798 = vsel %vm670, %v520, %v734
    %v799 = vsel %vm671, %v525, %v735
    %v800 = vsel %vm672, %v528, %v736
    %v801 = vsel %vm673, %v533, %v737
    %v802 = vsel %vm674, %v536, %v738
    %v803 = vsel %vm675, %v541, %v739
    %v804 = vsel %vm676, %v544, %v740
    %v805 = vsel %vm677, %v549, %v741
    %v806 = vsel %vm678, %v552, %v742
    %v807 = vsel %vm679, %v557, %v743
    %v808 = vsel %vm680, %v560, %v744
    %v809 = vsel %vm681, %v565, %v745
    %v810 = vsel %vm682, %v568, %v746
    %v811 = vsel %vm683, %v573, %v747
    %v812 = vsel %vm684, %v576, %v748
    %v813 = vsel %vm685, %v581, %v749
    %v814 = vsel %vm686, %v584, %v750
    %v815 = vsel %vm687, %v589, %v751
    %v816 = vsel %vm688, %v592, %v752
    %v817 = vsel %vm689, %v597, %v753
    %v818 = vsel %vm690, %v600, %v754
    %v819 = vsel %vm691, %v605, %v755
    %v820 = vsel %vm692, %v608, %v756
    %v821 = vsel %vm693, %v613, %v757
    %v822 = vsel %vm694, %v616, %v758
    %v823 = vsel %vm695, %v621, %v759
    %v824 = vsel %vm696, %v624, %v760
    %v825 = vsel %vm697, %v629, %v761
    %v826 = vsel %vm698, %v632, %v762
    %v827 = vpack.c.bf16 %v764, %v763
    %v828 = vpack.c.bf16 %v766, %v765
    %v829 = vpack.c.bf16 %v768, %v767
    %v830 = vpack.c.bf16 %v770, %v769
    %v831 = vpack.c.bf16 %v772, %v771
    %v832 = vpack.c.bf16 %v774, %v773
    %v833 = vpack.c.bf16 %v776, %v775
    %v834 = vpack.c.bf16 %v778, %v777
    %v835 = vpack.c.bf16 %v780, %v779
    %v836 = vpack.c.bf16 %v782, %v781
    %v837 = vpack.c.bf16 %v784, %v783
    %v838 = vpack.c.bf16 %v786, %v785
    %v839 = vpack.c.bf16 %v788, %v787
    %v840 = vpack.c.bf16 %v790, %v789
    %v841 = vpack.c.bf16 %v792, %v791
    %v842 = vpack.c.bf16 %v794, %v793
    %v843 = vpack.c.bf16 %v796, %v795
    %v844 = vpack.c.bf16 %v798, %v797
    %v845 = vpack.c.bf16 %v800, %v799
    %v846 = vpack.c.bf16 %v802, %v801
    %v847 = vpack.c.bf16 %v804, %v803
    %v848 = vpack.c.bf16 %v806, %v805
    %v849 = vpack.c.bf16 %v808, %v807
    %v850 = vpack.c.bf16 %v810, %v809
    %v851 = vpack.c.bf16 %v812, %v811
    %v852 = vpack.c.bf16 %v814, %v813
    %v853 = vpack.c.bf16 %v816, %v815
    %v854 = vpack.c.bf16 %v818, %v817
    %v855 = vpack.c.bf16 %v820, %v819
    %v856 = vpack.c.bf16 %v822, %v821
    %v857 = vpack.c.bf16 %v824, %v823
    %v858 = vpack.c.bf16 %v826, %v825
    %v891 = vunpack.c.l.b16 %v827
    %v892 = vunpack.c.h.b16 %v827
    %v893 = vunpack.c.l.b16 %v828
    %v894 = vunpack.c.h.b16 %v828
    %v895 = vunpack.c.l.b16 %v829
    %v896 = vunpack.c.h.b16 %v829
    %v897 = vunpack.c.l.b16 %v830
    %v898 = vunpack.c.h.b16 %v830
    %v899 = vunpack.c.l.b16 %v831
    %v900 = vunpack.c.h.b16 %v831
    %v901 = vunpack.c.l.b16 %v832
    %v902 = vunpack.c.h.b16 %v832
    %v903 = vunpack.c.l.b16 %v833
    %v904 = vunpack.c.h.b16 %v833
    %v905 = vunpack.c.l.b16 %v834
    %v906 = vunpack.c.h.b16 %v834
    %v907 = vunpack.c.l.b16 %v835
    %v908 = vunpack.c.h.b16 %v835
    %v909 = vunpack.c.l.b16 %v836
    %v910 = vunpack.c.h.b16 %v836
    %v911 = vunpack.c.l.b16 %v837
    %v912 = vunpack.c.h.b16 %v837
    %v913 = vunpack.c.l.b16 %v838
    %v914 = vunpack.c.h.b16 %v838
    %v915 = vunpack.c.l.b16 %v839
    %v916 = vunpack.c.h.b16 %v839
    %v917 = vunpack.c.l.b16 %v840
    %v918 = vunpack.c.h.b16 %v840
    %v919 = vunpack.c.l.b16 %v841
    %v920 = vunpack.c.h.b16 %v841
    %v921 = vunpack.c.l.b16 %v842
    %v922 = vunpack.c.h.b16 %v842
    %v923 = vunpack.c.l.b16 %v843
    %v924 = vunpack.c.h.b16 %v843
    %v925 = vunpack.c.l.b16 %v844
    %v926 = vunpack.c.h.b16 %v844
    %v927 = vunpack.c.l.b16 %v845
    %v928 = vunpack.c.h.b16 %v845
    %v929 = vunpack.c.l.b16 %v846
    %v930 = vunpack.c.h.b16 %v846
    %v931 = vunpack.c.l.b16 %v847
    %v932 = vunpack.c.h.b16 %v847
    %v933 = vunpack.c.l.b16 %v848
    %v934 = vunpack.c.h.b16 %v848
    %v935 = vunpack.c.l.b16 %v849
    %v936 = vunpack.c.h.b16 %v849
    %v937 = vunpack.c.l.b16 %v850
    %v938 = vunpack.c.h.b16 %v850
    %v939 = vunpack.c.l.b16 %v851
    %v940 = vunpack.c.h.b16 %v851
    %v941 = vunpack.c.l.b16 %v852
    %v942 = vunpack.c.h.b16 %v852
    %v943 = vunpack.c.l.b16 %v853
    %v944 = vunpack.c.h.b16 %v853
    %v945 = vunpack.c.l.b16 %v854
    %v946 = vunpack.c.h.b16 %v854
    %v947 = vunpack.c.l.b16 %v855
    %v948 = vunpack.c.h.b16 %v855
    %v949 = vunpack.c.l.b16 %v856
    %v950 = vunpack.c.h.b16 %v856
    %v951 = vunpack.c.l.b16 %v857
    %v952 = vunpack.c.h.b16 %v857
    %v953 = vunpack.c.l.b16 %v858
    %v954 = vunpack.c.h.b16 %v858
    %v955 = vpack.c.b16 %v891, %v891
    %v956 = vpack.c.b16 %v892, %v892
    %v957 = vpack.c.b16 %v893, %v893
    %v958 = vpack.c.b16 %v894, %v894
    %v959 = vpack.c.b16 %v895, %v895
    %v960 = vpack.c.b16 %v896, %v896
    %v961 = vpack.c.b16 %v897, %v897
    %v962 = vpack.c.b16 %v898, %v898
    %v963 = vpack.c.b16 %v899, %v899
    %v964 = vpack.c.b16 %v900, %v900
    %v965 = vpack.c.b16 %v901, %v901
    %v966 = vpack.c.b16 %v902, %v902
    %v967 = vpack.c.b16 %v903, %v903
    %v968 = vpack.c.b16 %v904, %v904
    %v969 = vpack.c.b16 %v905, %v905
    %v970 = vpack.c.b16 %v906, %v906
    %v971 = vpack.c.b16 %v907, %v907
    %v972 = vpack.c.b16 %v908, %v908
    %v973 = vpack.c.b16 %v909, %v909
    %v974 = vpack.c.b16 %v910, %v910
    %v975 = vpack.c.b16 %v911, %v911
    %v976 = vpack.c.b16 %v912, %v912
    %v977 = vpack.c.b16 %v913, %v913
    %v978 = vpack.c.b16 %v914, %v914
    %v979 = vpack.c.b16 %v915, %v915
    %v980 = vpack.c.b16 %v916, %v916
    %v981 = vpack.c.b16 %v917, %v917
    %v982 = vpack.c.b16 %v918, %v918
    %v983 = vpack.c.b16 %v919, %v919
    %v984 = vpack.c.b16 %v920, %v920
    %v985 = vpack.c.b16 %v921, %v921
    %v986 = vpack.c.b16 %v922, %v922
    %v987 = vpack.c.b16 %v923, %v923
    %v988 = vpack.c.b16 %v924, %v924
    %v989 = vpack.c.b16 %v925, %v925
    %v990 = vpack.c.b16 %v926, %v926
    %v991 = vpack.c.b16 %v927, %v927
    %v992 = vpack.c.b16 %v928, %v928
    %v993 = vpack.c.b16 %v929, %v929
    %v994 = vpack.c.b16 %v930, %v930
    %v995 = vpack.c.b16 %v931, %v931
    %v996 = vpack.c.b16 %v932, %v932
    %v997 = vpack.c.b16 %v933, %v933
    %v998 = vpack.c.b16 %v934, %v934
    %v999 = vpack.c.b16 %v935, %v935
    %v1000 = vpack.c.b16 %v936, %v936
    %v1001 = vpack.c.b16 %v937, %v937
    %v1002 = vpack.c.b16 %v938, %v938
    %v1003 = vpack.c.b16 %v939, %v939
    %v1004 = vpack.c.b16 %v940, %v940
    %v1005 = vpack.c.b16 %v941, %v941
    %v1006 = vpack.c.b16 %v942, %v942
    %v1007 = vpack.c.b16 %v943, %v943
    %v1008 = vpack.c.b16 %v944, %v944
    %v1009 = vpack.c.b16 %v945, %v945
    %v1010 = vpack.c.b16 %v946, %v946
    %v1011 = vpack.c.b16 %v947, %v947
    %v1012 = vpack.c.b16 %v948, %v948
    %v1013 = vpack.c.b16 %v949, %v949
    %v1014 = vpack.c.b16 %v950, %v950
    %v1015 = vpack.c.b16 %v951, %v951
    %v1016 = vpack.c.b16 %v952, %v952
    %v1017 = vpack.c.b16 %v953, %v953
    %v1018 = vpack.c.b16 %v954, %v954
    %vm1083 = vcmask 519168
    %1084 = vst.msk [vmem:[%s2] sm:$0xf] %vm1083, %v955
    %1085 = vst.msk [vmem:[%s2 + $0x4] sm:$0xf] %vm1083, %v956
    %1086 = vst.msk [vmem:[%s2 + $0x8] sm:$0xf] %vm1083, %v957
    %1087 = vst.msk [vmem:[%s2 + $0xc] sm:$0xf] %vm1083, %v958
    %1088 = vst.msk [vmem:[%s2 + $0x10] sm:$0xf] %vm1083, %v959
    %1089 = vst.msk [vmem:[%s2 + $0x14] sm:$0xf] %vm1083, %v960
    %1090 = vst.msk [vmem:[%s2 + $0x18] sm:$0xf] %vm1083, %v961
    %1091 = vst.msk [vmem:[%s2 + $0x1c] sm:$0xf] %vm1083, %v962
    %1092 = vst.msk [vmem:[%s2 + $0x20] sm:$0xf] %vm1083, %v963
    %1093 = vst.msk [vmem:[%s2 + $0x24] sm:$0xf] %vm1083, %v964
    %1094 = vst.msk [vmem:[%s2 + $0x28] sm:$0xf] %vm1083, %v965
    %1095 = vst.msk [vmem:[%s2 + $0x2c] sm:$0xf] %vm1083, %v966
    %1096 = vst.msk [vmem:[%s2 + $0x30] sm:$0xf] %vm1083, %v967
    %1097 = vst.msk [vmem:[%s2 + $0x34] sm:$0xf] %vm1083, %v968
    %1098 = vst.msk [vmem:[%s2 + $0x38] sm:$0xf] %vm1083, %v969
    %1099 = vst.msk [vmem:[%s2 + $0x3c] sm:$0xf] %vm1083, %v970
    %1100 = vst.msk [vmem:[%s2 + $0x40] sm:$0xf] %vm1083, %v971
    %1101 = vst.msk [vmem:[%s2 + $0x44] sm:$0xf] %vm1083, %v972
    %1102 = vst.msk [vmem:[%s2 + $0x48] sm:$0xf] %vm1083, %v973
    %1103 = vst.msk [vmem:[%s2 + $0x4c] sm:$0xf] %vm1083, %v974
    %1104 = vst.msk [vmem:[%s2 + $0x50] sm:$0xf] %vm1083, %v975
    %1105 = vst.msk [vmem:[%s2 + $0x54] sm:$0xf] %vm1083, %v976
    %1106 = vst.msk [vmem:[%s2 + $0x58] sm:$0xf] %vm1083, %v977
    %1107 = vst.msk [vmem:[%s2 + $0x5c] sm:$0xf] %vm1083, %v978
    %1108 = vst.msk [vmem:[%s2 + $0x60] sm:$0xf] %vm1083, %v979
    %1109 = vst.msk [vmem:[%s2 + $0x64] sm:$0xf] %vm1083, %v980
    %1110 = vst.msk [vmem:[%s2 + $0x68] sm:$0xf] %vm1083, %v981
    %1111 = vst.msk [vmem:[%s2 + $0x6c] sm:$0xf] %vm1083, %v982
    %1112 = vst.msk [vmem:[%s2 + $0x70] sm:$0xf] %vm1083, %v983
    %1113 = vst.msk [vmem:[%s2 + $0x74] sm:$0xf] %vm1083, %v984
    %1114 = vst.msk [vmem:[%s2 + $0x78] sm:$0xf] %vm1083, %v985
    %1115 = vst.msk [vmem:[%s2 + $0x7c] sm:$0xf] %vm1083, %v986
    %1116 = vst.msk [vmem:[%s2 + $0x80] sm:$0xf] %vm1083, %v987
    %1117 = vst.msk [vmem:[%s2 + $0x84] sm:$0xf] %vm1083, %v988
    %1118 = vst.msk [vmem:[%s2 + $0x88] sm:$0xf] %vm1083, %v989
    %1119 = vst.msk [vmem:[%s2 + $0x8c] sm:$0xf] %vm1083, %v990
    %1120 = vst.msk [vmem:[%s2 + $0x90] sm:$0xf] %vm1083, %v991
    %1121 = vst.msk [vmem:[%s2 + $0x94] sm:$0xf] %vm1083, %v992
    %1122 = vst.msk [vmem:[%s2 + $0x98] sm:$0xf] %vm1083, %v993
    %1123 = vst.msk [vmem:[%s2 + $0x9c] sm:$0xf] %vm1083, %v994
    %1124 = vst.msk [vmem:[%s2 + $0xa0] sm:$0xf] %vm1083, %v995
    %1125 = vst.msk [vmem:[%s2 + $0xa4] sm:$0xf] %vm1083, %v996
    %1126 = vst.msk [vmem:[%s2 + $0xa8] sm:$0xf] %vm1083, %v997
    %1127 = vst.msk [vmem:[%s2 + $0xac] sm:$0xf] %vm1083, %v998
    %1128 = vst.msk [vmem:[%s2 + $0xb0] sm:$0xf] %vm1083, %v999
    %1129 = vst.msk [vmem:[%s2 + $0xb4] sm:$0xf] %vm1083, %v1000
    %1130 = vst.msk [vmem:[%s2 + $0xb8] sm:$0xf] %vm1083, %v1001
    %1131 = vst.msk [vmem:[%s2 + $0xbc] sm:$0xf] %vm1083, %v1002
    %1132 = vst.msk [vmem:[%s2 + $0xc0] sm:$0xf] %vm1083, %v1003
    %1133 = vst.msk [vmem:[%s2 + $0xc4] sm:$0xf] %vm1083, %v1004
    %1134 = vst.msk [vmem:[%s2 + $0xc8] sm:$0xf] %vm1083, %v1005
    %1135 = vst.msk [vmem:[%s2 + $0xcc] sm:$0xf] %vm1083, %v1006
    %1136 = vst.msk [vmem:[%s2 + $0xd0] sm:$0xf] %vm1083, %v1007
    %1137 = vst.msk [vmem:[%s2 + $0xd4] sm:$0xf] %vm1083, %v1008
    %1138 = vst.msk [vmem:[%s2 + $0xd8] sm:$0xf] %vm1083, %v1009
    %1139 = vst.msk [vmem:[%s2 + $0xdc] sm:$0xf] %vm1083, %v1010
    %1140 = vst.msk [vmem:[%s2 + $0xe0] sm:$0xf] %vm1083, %v1011
    %1141 = vst.msk [vmem:[%s2 + $0xe4] sm:$0xf] %vm1083, %v1012
    %1142 = vst.msk [vmem:[%s2 + $0xe8] sm:$0xf] %vm1083, %v1013
    %1143 = vst.msk [vmem:[%s2 + $0xec] sm:$0xf] %vm1083, %v1014
    %1144 = vst.msk [vmem:[%s2 + $0xf0] sm:$0xf] %vm1083, %v1015
    %1145 = vst.msk [vmem:[%s2 + $0xf4] sm:$0xf] %vm1083, %v1016
    %1146 = vst.msk [vmem:[%s2 + $0xf8] sm:$0xf] %vm1083, %v1017
    %1147 = vst.msk [vmem:[%s2 + $0xfc] sm:$0xf] %vm1083, %v1018
    // Predicated region
    $region14: #{tpu_custom_call.1} parent=1 // pred_check
      _
    $region15: #{tpu_custom_call.1} parent=1 // pred_check_branch
      %1149 = sbr.rel (0) target = $region17
    $region16: #{tpu_custom_call.1} parent=1 // pred_region
      _
    $region17: #{tpu_custom_call.1} parent=1 // pred_fallthru
      _
    // Predicated region
    $region18: #{tpu_custom_call.1} parent=1 // pred_check
      _
    $region19: #{tpu_custom_call.1} parent=1 // pred_check_branch
      %1151 = sbr.rel (0) target = $region21
    $region20: #{tpu_custom_call.1} parent=1 // pred_region
      _
    $region21: #{tpu_custom_call.1} parent=1 // pred_fallthru
      _
    %1152 = vsyncpa [#allocation3], 1

</llo_original>
